<compile_context>
chip_gen: v7x
topology: tpu7x:2x2x1
jax: 0.10.0
libtpu: 0.0.40
codegen_flags: <defaults>
</compile_context>

<pallas_src>
import functools
import math

import jax
import jax.numpy as jnp
from jax import lax
from jax.experimental import pallas as pl
from jax.experimental.pallas import tpu as pltpu


# ---------------------------------------------------------------------------
# Tiling helper
# ---------------------------------------------------------------------------
def _pick_tile(n, target, align):
    """Largest tile <= target that divides n and is a multiple of `align`;
    otherwise the full extent n (full extent is always legal)."""
    if n <= target:
        return n
    t = (target // align) * align
    while t >= align:
        if n % t == 0:
            return t
        t -= align
    return n


# ---------------------------------------------------------------------------
# Fused QKV projection: x @ [Wq | Wk | Wv]   (use_bias=False)
# Outputs head-major (H, B*N, dh) in compute dtype; softmax scale folded into
# q in the K-finalize (invariant across the attention KV loop).
# ---------------------------------------------------------------------------
def _qkv_kernel(x_ref, wq_ref, wk_ref, wv_ref,
                q_ref, k_ref, v_ref,
                acc_q, acc_k, acc_v,
                *, heads, dim_head, scale, compute_dtype):
    kk = pl.program_id(1)

    @pl.when(kk == 0)
    def _():
        acc_q[...] = jnp.zeros_like(acc_q)
        acc_k[...] = jnp.zeros_like(acc_k)
        acc_v[...] = jnp.zeros_like(acc_v)

    # Weights are already stored in compute dtype -> no per-step weight casts.
    xb = x_ref[...].astype(compute_dtype)
    acc_q[...] += jnp.dot(xb, wq_ref[...], preferred_element_type=jnp.float32)
    acc_k[...] += jnp.dot(xb, wk_ref[...], preferred_element_type=jnp.float32)
    acc_v[...] += jnp.dot(xb, wv_ref[...], preferred_element_type=jnp.float32)

    @pl.when(kk == pl.num_programs(1) - 1)
    def _():
        # Finalize-only head split (once per q-tile, never in the KV loop).
        for h in range(heads):
            sl = slice(h * dim_head, (h + 1) * dim_head)
            q_ref[h] = (acc_q[:, sl] * scale).astype(q_ref.dtype)
            k_ref[h] = acc_k[:, sl].astype(k_ref.dtype)
            v_ref[h] = acc_v[:, sl].astype(v_ref.dtype)


def qkv_projection_headmajor(x2d, w_q, w_k, w_v, *, heads, dim_head, scale,
                             compute_dtype, tm_target=256, tk_target=512):
    M, K = x2d.shape
    inner = heads * dim_head
    tm = _pick_tile(M, tm_target, 8)
    tk = _pick_tile(K, tk_target, 128)
    grid = (M // tm, K // tk)

    x_spec = pl.BlockSpec((tm, tk), lambda i, k: (i, k))
    w_spec = pl.BlockSpec((tk, inner), lambda i, k: (k, 0))
    o_spec = pl.BlockSpec((heads, tm, dim_head), lambda i, k: (0, i, 0))
    out_sds = jax.ShapeDtypeStruct((heads, M, dim_head), compute_dtype)

    cost = pl.CostEstimate(
        flops=int(2 * 3 * M * K * inner),
        transcendentals=0,
        bytes_accessed=int(M * K * jnp.dtype(x2d.dtype).itemsize
                           + 3 * K * inner * jnp.dtype(w_q.dtype).itemsize
                           + 3 * M * inner * jnp.dtype(compute_dtype).itemsize))

    kern = functools.partial(_qkv_kernel, heads=heads, dim_head=dim_head,
                             scale=scale, compute_dtype=compute_dtype)
    return pl.pallas_call(
        kern,
        out_shape=(out_sds, out_sds, out_sds),
        grid_spec=pltpu.PrefetchScalarGridSpec(
            num_scalar_prefetch=0,
            grid=grid,
            in_specs=[x_spec, w_spec, w_spec, w_spec],
            out_specs=(o_spec, o_spec, o_spec),
            scratch_shapes=[pltpu.VMEM((tm, inner), jnp.float32)
                            for _ in range(3)]),
        compiler_params=pltpu.CompilerParams(
            dimension_semantics=("parallel", "arbitrary")),
        cost_estimate=cost,
    )(x2d, w_q, w_k, w_v)


# ---------------------------------------------------------------------------
# Flash attention on head-major (H, B*N, dh) data, head on the grid.
# q is pre-scaled; all softmax math in f32 (v5e-safe); bf16 MXU operands.
# ---------------------------------------------------------------------------
def _flash_kernel(q_ref, k_ref, v_ref, o_ref, m_sc, l_sc, acc_sc):
    ki = pl.program_id(3)

    @pl.when(ki == 0)
    def _():
        m_sc[...] = jnp.full_like(m_sc, -jnp.inf)
        l_sc[...] = jnp.zeros_like(l_sc)
        acc_sc[...] = jnp.zeros_like(acc_sc)

    # q @ k^T without an explicit transpose: contract dim 1 with dim 1.
    s = lax.dot_general(q_ref[0], k_ref[0],
                        dimension_numbers=(((1,), (1,)), ((), ())),
                        preferred_element_type=jnp.float32)      # (tq, tkv) f32
    m_prev = m_sc[...]                                           # (tq, 1)
    m_new = jnp.maximum(m_prev, jnp.max(s, axis=-1, keepdims=True))
    alpha = jnp.exp(m_prev - m_new)
    p = jnp.exp(s - m_new)                                       # f32
    l_sc[...] = alpha * l_sc[...] + jnp.sum(p, axis=-1, keepdims=True)
    acc_sc[...] = alpha * acc_sc[...] + jnp.dot(
        p.astype(v_ref.dtype), v_ref[0], preferred_element_type=jnp.float32)
    m_sc[...] = m_new

    @pl.when(ki == pl.num_programs(3) - 1)
    def _():
        inv_l = pl.reciprocal(l_sc[...], approx=True)            # EUP slot
        o_ref[0] = (acc_sc[...] * inv_l).astype(o_ref.dtype)     # whole-tile store


def flash_mha_headmajor(q, k, v, *, batch, seq, tq_target=256, tkv_target=512):
    H, M, dh = q.shape
    N = seq
    assert M == batch * N
    # TODO(synk): pad N to a multiple of 8 for arbitrary sequence lengths.
    assert N % 8 == 0 or N == M, "sequence length must be a multiple of 8"
    tq = _pick_tile(N, tq_target, 8)
    tkv = _pick_tile(N, tkv_target, 128)     # lane dim of sim / contraction of p@v
    nq, nkv = N // tq, N // tkv
    grid = (batch, H, nq, nkv)

    q_spec = pl.BlockSpec((1, tq, dh), lambda b, h, qi, ki: (h, b * nq + qi, 0))
    kv_spec = pl.BlockSpec((1, tkv, dh), lambda b, h, qi, ki: (h, b * nkv + ki, 0))
    o_spec = pl.BlockSpec((1, tq, dh), lambda b, h, qi, ki: (h, b * nq + qi, 0))

    itemsize = jnp.dtype(q.dtype).itemsize
    cost = pl.CostEstimate(
        flops=int(4 * batch * H * N * N * dh),
        transcendentals=int(batch * H * N * N),
        # q + out once, K/V re-read N/tq times each.
        bytes_accessed=int(batch * H * N * dh * itemsize * (2 + 2 * nq)))

    return pl.pallas_call(
        _flash_kernel,
        out_shape=jax.ShapeDtypeStruct((H, M, dh), q.dtype),
        grid_spec=pltpu.PrefetchScalarGridSpec(
            num_scalar_prefetch=0,
            grid=grid,
            in_specs=[q_spec, kv_spec, kv_spec],
            out_specs=o_spec,
            scratch_shapes=[
                pltpu.VMEM((tq, 1), jnp.float32),    # running max
                pltpu.VMEM((tq, 1), jnp.float32),    # running sum
                pltpu.VMEM((tq, dh), jnp.float32),   # running output
            ]),
        compiler_params=pltpu.CompilerParams(
            dimension_semantics=("parallel", "parallel", "parallel", "arbitrary")),
        cost_estimate=cost,
    )(q, k, v)


# ---------------------------------------------------------------------------
# Output projection from head-major input: sum_h x[h] @ Wout[h] + b
# (no transpose back to (B, N, H*dh) needed)
# ---------------------------------------------------------------------------
def _out_proj_kernel(x_ref, w_ref, b_ref, o_ref, acc_ref):
    h = pl.program_id(2)

    @pl.when(h == 0)
    def _():
        acc_ref[...] = jnp.zeros_like(acc_ref)

    acc_ref[...] += jnp.dot(x_ref[0], w_ref[0],
                            preferred_element_type=jnp.float32)

    @pl.when(h == pl.num_programs(2) - 1)
    def _():
        o_ref[...] = (acc_ref[...] + b_ref[...].astype(jnp.float32)).astype(o_ref.dtype)


def out_projection_headmajor(x_hm, w_out_hm, b_out, out_dtype, *,
                             tm_target=256, tn_target=512):
    H, M, dh = x_hm.shape
    dim = w_out_hm.shape[-1]
    tm = _pick_tile(M, tm_target, 8)
    tn = _pick_tile(dim, tn_target, 128)
    grid = (M // tm, dim // tn, H)

    cost = pl.CostEstimate(
        flops=int(2 * M * H * dh * dim),
        transcendentals=0,
        bytes_accessed=int(
            (M * H * dh * (dim // tn) + H * dh * dim * (M // tm))
            * jnp.dtype(x_hm.dtype).itemsize
            + M * dim * jnp.dtype(out_dtype).itemsize + dim * 4))

    return pl.pallas_call(
        _out_proj_kernel,
        out_shape=jax.ShapeDtypeStruct((M, dim), out_dtype),
        grid_spec=pltpu.PrefetchScalarGridSpec(
            num_scalar_prefetch=0,
            grid=grid,
            in_specs=[
                pl.BlockSpec((1, tm, dh), lambda i, j, h: (h, i, 0)),
                pl.BlockSpec((1, dh, tn), lambda i, j, h: (h, 0, j)),
                pl.BlockSpec((1, tn), lambda i, j, h: (0, j)),
            ],
            out_specs=pl.BlockSpec((tm, tn), lambda i, j, h: (i, j)),
            scratch_shapes=[pltpu.VMEM((tm, tn), jnp.float32)]),
        compiler_params=pltpu.CompilerParams(
            dimension_semantics=("parallel", "parallel", "arbitrary")),
        cost_estimate=cost,
    )(x_hm, w_out_hm, b_out.reshape(1, dim))


# ---------------------------------------------------------------------------
# Attention module (vanilla self-attention path)
# ---------------------------------------------------------------------------
class AttentionPallas:
    def __init__(self, dim, heads=8, dim_head=64, key=None,
                 param_dtype=jnp.bfloat16):
        self.dim = dim
        self.heads = heads
        self.dim_head = dim_head
        self.inner_dim = heads * dim_head
        self.scale = dim_head ** (-0.5)
        self.param_dtype = param_dtype

        kq, kk, kv, ko = jax.random.split(key, 4)

        # JaxLinear init: trunc_normal(std=sqrt(1/fan_in), a=-2std, b=2std)
        def jax_linear_w(k, fan_in, fan_out):
            std = math.sqrt(1.0 / fan_in)
            w = jax.random.truncated_normal(
                k, -2.0, 2.0, (fan_in, fan_out), dtype=jnp.float32) * std
            return w.astype(param_dtype)        # stored once in compute dtype

        # to_qkv: Linear(dim -> 3*inner), bias=False — stored as 3 column blocks.
        self.w_q = jax_linear_w(kq, dim, self.inner_dim)
        self.w_k = jax_linear_w(kk, dim, self.inner_dim)
        self.w_v = jax_linear_w(kv, dim, self.inner_dim)
        # to_out: Linear(inner -> dim), bias=True (zero-init), stored head-major.
        self.w_out = jax_linear_w(ko, self.inner_dim, dim).reshape(
            heads, dim_head, dim)
        self.b_out = jnp.zeros((dim,), jnp.float32)

    def __call__(self, x):
        B, N, D = x.shape
        x2d = x.reshape(B * N, D)               # free reshape

        # Fused tri-output QKV projection -> head-major bf16 q/k/v (q pre-scaled).
        q, k, v = qkv_projection_headmajor(
            x2d, self.w_q, self.w_k, self.w_v,
            heads=self.heads, dim_head=self.dim_head, scale=self.scale,
            compute_dtype=self.param_dtype)

        # Flash attention, head on the grid, whole-tile operands.
        attn_out = flash_mha_headmajor(q, k, v, batch=B, seq=N)

        # Output projection directly from head-major layout; Dropout(0.0) = id.
        out2d = out_projection_headmajor(attn_out, self.w_out, self.b_out,
                                         out_dtype=x.dtype)
        return out2d.reshape(B, N, D)


# ---------------------------------------------------------------------------
# Pure-JAX f32 reference (same math as the PyTorch module, using the module's
# stored weights upcast to f32)
# ---------------------------------------------------------------------------
def reference_forward(mod: AttentionPallas, x):
    B, N, D = x.shape
    H, dh = mod.heads, mod.dim_head
    wq = mod.w_q.astype(jnp.float32)
    wk = mod.w_k.astype(jnp.float32)
    wv = mod.w_v.astype(jnp.float32)
    wo = mod.w_out.astype(jnp.float32).reshape(H * dh, D)
    x2d = x.reshape(B * N, D).astype(jnp.float32)

    def to_heads(t):
        return t.reshape(B, N, H, dh).transpose(0, 2, 1, 3)

    q, k, v = to_heads(x2d @ wq), to_heads(x2d @ wk), to_heads(x2d @ wv)
    sim = jnp.einsum('bhnd,bhmd->bhnm', q, k) * mod.scale
    attn = jax.nn.softmax(sim, axis=-1)
    out = jnp.einsum('bhnm,bhmd->bhnd', attn, v)
    out = out.transpose(0, 2, 1, 3).reshape(B * N, H * dh)
    out = out @ wo + mod.b_out
    return out.reshape(B, N, D)


if __name__ == "__main__":
    key = jax.random.PRNGKey(0)
    kx, kp = jax.random.split(key)

    B, N, dim = 2, 8, 32
    heads, dim_head = 4, 16

    x = jax.random.normal(kx, (B, N, dim), dtype=jnp.float32)

    # Tight check: f32 parameters + f32 compute path (same kernel structure).
    mod_f32 = AttentionPallas(dim=dim, heads=heads, dim_head=dim_head, key=kp,
                              param_dtype=jnp.float32)
    ref_f32 = reference_forward(mod_f32, x)
    out_f32 = jax.block_until_ready(mod_f32(x))
    assert out_f32.shape == (B, N, dim)
    assert jnp.allclose(out_f32, ref_f32, atol=1e-2, rtol=1e-2), "f32 path mismatch"

    # Default (performance) path: bf16 weights + bf16 q/k/v intermediates,
    # f32 accumulation / softmax.
    mod_bf16 = AttentionPallas(dim=dim, heads=heads, dim_head=dim_head, key=kp,
                               param_dtype=jnp.bfloat16)
    ref_bf16 = reference_forward(mod_bf16, x)   # f32 math on the bf16 weights
    out = jax.block_until_ready(mod_bf16(x))
    assert out.shape == (B, N, dim)
    max_err = float(jnp.max(jnp.abs(out.astype(jnp.float32) - ref_bf16)))
    assert max_err < 1e-1, f"bf16 path mismatch vs reference: max abs err {max_err}"

    print("KERNEL_OK")
</pallas_src>

<mosaic_0001>
module attributes {stable_mosaic.version = 11 : i64} {
  func.func @_qkv_kernel(%arg0: i32, %arg1: i32, %arg2: memref<16x32xf32, #tpu.memory_space<vmem>>, %arg3: memref<32x64xf32, #tpu.memory_space<vmem>>, %arg4: memref<32x64xf32, #tpu.memory_space<vmem>>, %arg5: memref<32x64xf32, #tpu.memory_space<vmem>>, %arg6: memref<4x16x16xf32, #tpu.memory_space<vmem>>, %arg7: memref<4x16x16xf32, #tpu.memory_space<vmem>>, %arg8: memref<4x16x16xf32, #tpu.memory_space<vmem>>, %arg9: memref<16x64xf32, #tpu.memory_space<vmem>>, %arg10: memref<16x64xf32, #tpu.memory_space<vmem>>, %arg11: memref<16x64xf32, #tpu.memory_space<vmem>>) attributes {dimension_semantics = [#tpu.dimension_semantics<parallel>, #tpu.dimension_semantics<arbitrary>], iteration_bounds = array<i64: 1, 1>, scalar_prefetch = 0 : i64, scratch_operands = 3 : i64, tpu.core_type = #tpu.core_type<tc>, window_params = [{transform_indices = @transform_0, window_bounds = array<i64: 16, 32>}, {transform_indices = @transform_1, window_bounds = array<i64: 32, 64>}, {transform_indices = @transform_2, window_bounds = array<i64: 32, 64>}, {transform_indices = @transform_3, window_bounds = array<i64: 32, 64>}, {transform_indices = @transform_4, window_bounds = array<i64: 4, 16, 16>}, {transform_indices = @transform_5, window_bounds = array<i64: 4, 16, 16>}, {transform_indices = @transform_6, window_bounds = array<i64: 4, 16, 16>}]} {
    %c0_i32 = arith.constant 0 : i32
    %0 = arith.cmpi eq, %arg1, %c0_i32 : i32
    %1 = arith.extui %0 : i1 to i32
    %c0_i32_0 = arith.constant 0 : i32
    %2 = arith.cmpi ne, %1, %c0_i32_0 : i32
    scf.if %2 {
      %cst_24 = arith.constant 0.000000e+00 : f32
      %22 = vector.broadcast %cst_24 : f32 to vector<16x64xf32>
      %c0_25 = arith.constant 0 : index
      %c0_26 = arith.constant 0 : index
      %23 = vector.load %arg9[%c0_25, %c0_26] : memref<16x64xf32, #tpu.memory_space<vmem>>, vector<16x64xf32>
      tpu.vector_store %arg9[%c0_25, %c0_26], %22 {strides = array<i32>} : memref<16x64xf32, #tpu.memory_space<vmem>>, vector<16x64xf32>,
      %cst_27 = arith.constant 0.000000e+00 : f32
      %24 = vector.broadcast %cst_27 : f32 to vector<16x64xf32>
      %c0_28 = arith.constant 0 : index
      %c0_29 = arith.constant 0 : index
      %25 = vector.load %arg10[%c0_28, %c0_29] : memref<16x64xf32, #tpu.memory_space<vmem>>, vector<16x64xf32>
      tpu.vector_store %arg10[%c0_28, %c0_29], %24 {strides = array<i32>} : memref<16x64xf32, #tpu.memory_space<vmem>>, vector<16x64xf32>,
      %cst_30 = arith.constant 0.000000e+00 : f32
      %26 = vector.broadcast %cst_30 : f32 to vector<16x64xf32>
      %c0_31 = arith.constant 0 : index
      %c0_32 = arith.constant 0 : index
      %27 = vector.load %arg11[%c0_31, %c0_32] : memref<16x64xf32, #tpu.memory_space<vmem>>, vector<16x64xf32>
      tpu.vector_store %arg11[%c0_31, %c0_32], %26 {strides = array<i32>} : memref<16x64xf32, #tpu.memory_space<vmem>>, vector<16x64xf32>,
    } else {
    }
    %c0 = arith.constant 0 : index
    %c0_1 = arith.constant 0 : index
    %3 = vector.load %arg2[%c0, %c0_1] : memref<16x32xf32, #tpu.memory_space<vmem>>, vector<16x32xf32>
    %c0_2 = arith.constant 0 : index
    %c0_3 = arith.constant 0 : index
    %4 = vector.load %arg9[%c0_2, %c0_3] : memref<16x64xf32, #tpu.memory_space<vmem>>, vector<16x64xf32>
    %c0_4 = arith.constant 0 : index
    %c0_5 = arith.constant 0 : index
    %5 = vector.load %arg3[%c0_4, %c0_5] : memref<32x64xf32, #tpu.memory_space<vmem>>, vector<32x64xf32>
    %cst = arith.constant dense<0.000000e+00> : vector<16x64xf32>
    %6 = tpu.matmul %3, %5, %cst {dimension_numbers = #tpu.dot_dimension_numbers<[1], [0], [0], [1], [0, 0, 1, 1], [], []>} : vector<16x32xf32>, vector<32x64xf32>, vector<16x64xf32> -> vector<16x64xf32>
    %7 = arith.addf %4, %6 : vector<16x64xf32>
    %c0_6 = arith.constant 0 : index
    %c0_7 = arith.constant 0 : index
    %8 = vector.load %arg9[%c0_6, %c0_7] : memref<16x64xf32, #tpu.memory_space<vmem>>, vector<16x64xf32>
    tpu.vector_store %arg9[%c0_6, %c0_7], %7 {strides = array<i32>} : memref<16x64xf32, #tpu.memory_space<vmem>>, vector<16x64xf32>,
    %c0_8 = arith.constant 0 : index
    %c0_9 = arith.constant 0 : index
    %9 = vector.load %arg10[%c0_8, %c0_9] : memref<16x64xf32, #tpu.memory_space<vmem>>, vector<16x64xf32>
    %c0_10 = arith.constant 0 : index
    %c0_11 = arith.constant 0 : index
    %10 = vector.load %arg4[%c0_10, %c0_11] : memref<32x64xf32, #tpu.memory_space<vmem>>, vector<32x64xf32>
    %cst_12 = arith.constant dense<0.000000e+00> : vector<16x64xf32>
    %11 = tpu.matmul %3, %10, %cst_12 {dimension_numbers = #tpu.dot_dimension_numbers<[1], [0], [0], [1], [0, 0, 1, 1], [], []>} : vector<16x32xf32>, vector<32x64xf32>, vector<16x64xf32> -> vector<16x64xf32>
    %12 = arith.addf %9, %11 : vector<16x64xf32>
    %c0_13 = arith.constant 0 : index
    %c0_14 = arith.constant 0 : index
    %13 = vector.load %arg10[%c0_13, %c0_14] : memref<16x64xf32, #tpu.memory_space<vmem>>, vector<16x64xf32>
    tpu.vector_store %arg10[%c0_13, %c0_14], %12 {strides = array<i32>} : memref<16x64xf32, #tpu.memory_space<vmem>>, vector<16x64xf32>,
    %c0_15 = arith.constant 0 : index
    %c0_16 = arith.constant 0 : index
    %14 = vector.load %arg11[%c0_15, %c0_16] : memref<16x64xf32, #tpu.memory_space<vmem>>, vector<16x64xf32>
    %c0_17 = arith.constant 0 : index
    %c0_18 = arith.constant 0 : index
    %15 = vector.load %arg5[%c0_17, %c0_18] : memref<32x64xf32, #tpu.memory_space<vmem>>, vector<32x64xf32>
    %cst_19 = arith.constant dense<0.000000e+00> : vector<16x64xf32>
    %16 = tpu.matmul %3, %15, %cst_19 {dimension_numbers = #tpu.dot_dimension_numbers<[1], [0], [0], [1], [0, 0, 1, 1], [], []>} : vector<16x32xf32>, vector<32x64xf32>, vector<16x64xf32> -> vector<16x64xf32>
    %17 = arith.addf %14, %16 : vector<16x64xf32>
    %c0_20 = arith.constant 0 : index
    %c0_21 = arith.constant 0 : index
    %18 = vector.load %arg11[%c0_20, %c0_21] : memref<16x64xf32, #tpu.memory_space<vmem>>, vector<16x64xf32>
    tpu.vector_store %arg11[%c0_20, %c0_21], %17 {strides = array<i32>} : memref<16x64xf32, #tpu.memory_space<vmem>>, vector<16x64xf32>,
    %c0_i32_22 = arith.constant 0 : i32
    %19 = arith.cmpi eq, %arg1, %c0_i32_22 : i32
    %20 = arith.extui %19 : i1 to i32
    %c0_i32_23 = arith.constant 0 : i32
    %21 = arith.cmpi ne, %20, %c0_i32_23 : i32
    scf.if %21 {
      %c0_24 = arith.constant 0 : index
      %c0_25 = arith.constant 0 : index
      %22 = vector.load %arg9[%c0_24, %c0_25] : memref<16x64xf32, #tpu.memory_space<vmem>>, vector<16x16xf32>
      %cst_26 = arith.constant 2.500000e-01 : f32
      %23 = vector.broadcast %cst_26 : f32 to vector<16x16xf32>
      %24 = arith.mulf %22, %23 : vector<16x16xf32>
      %c0_27 = arith.constant 0 : index
      %c0_28 = arith.constant 0 : index
      %c0_29 = arith.constant 0 : index
      %25 = vector.load %arg6[%c0_27, %c0_28, %c0_29] : memref<4x16x16xf32, #tpu.memory_space<vmem>>, vector<1x16x16xf32>
      %26 = vector.shape_cast %25 : vector<1x16x16xf32> to vector<16x16xf32>
      %27 = vector.shape_cast %24 : vector<16x16xf32> to vector<1x16x16xf32>
      tpu.vector_store %arg6[%c0_27, %c0_28, %c0_29], %27 {strides = array<i32>} : memref<4x16x16xf32, #tpu.memory_space<vmem>>, vector<1x16x16xf32>,
      %c0_30 = arith.constant 0 : index
      %c0_31 = arith.constant 0 : index
      %28 = vector.load %arg10[%c0_30, %c0_31] : memref<16x64xf32, #tpu.memory_space<vmem>>, vector<16x16xf32>
      %c0_32 = arith.constant 0 : index
      %c0_33 = arith.constant 0 : index
      %c0_34 = arith.constant 0 : index
      %29 = vector.load %arg7[%c0_32, %c0_33, %c0_34] : memref<4x16x16xf32, #tpu.memory_space<vmem>>, vector<1x16x16xf32>
      %30 = vector.shape_cast %29 : vector<1x16x16xf32> to vector<16x16xf32>
      %31 = vector.shape_cast %28 : vector<16x16xf32> to vector<1x16x16xf32>
      tpu.vector_store %arg7[%c0_32, %c0_33, %c0_34], %31 {strides = array<i32>} : memref<4x16x16xf32, #tpu.memory_space<vmem>>, vector<1x16x16xf32>,
      %c0_35 = arith.constant 0 : index
      %c0_36 = arith.constant 0 : index
      %32 = vector.load %arg11[%c0_35, %c0_36] : memref<16x64xf32, #tpu.memory_space<vmem>>, vector<16x16xf32>
      %c0_37 = arith.constant 0 : index
      %c0_38 = arith.constant 0 : index
      %c0_39 = arith.constant 0 : index
      %33 = vector.load %arg8[%c0_37, %c0_38, %c0_39] : memref<4x16x16xf32, #tpu.memory_space<vmem>>, vector<1x16x16xf32>
      %34 = vector.shape_cast %33 : vector<1x16x16xf32> to vector<16x16xf32>
      %35 = vector.shape_cast %32 : vector<16x16xf32> to vector<1x16x16xf32>
      tpu.vector_store %arg8[%c0_37, %c0_38, %c0_39], %35 {strides = array<i32>} : memref<4x16x16xf32, #tpu.memory_space<vmem>>, vector<1x16x16xf32>,
      %c0_40 = arith.constant 0 : index
      %c16 = arith.constant 16 : index
      %36 = vector.load %arg9[%c0_40, %c16] : memref<16x64xf32, #tpu.memory_space<vmem>>, vector<16x16xf32>
      %cst_41 = arith.constant 2.500000e-01 : f32
      %37 = vector.broadcast %cst_41 : f32 to vector<16x16xf32>
      %38 = arith.mulf %36, %37 : vector<16x16xf32>
      %c1 = arith.constant 1 : index
      %c0_42 = arith.constant 0 : index
      %c0_43 = arith.constant 0 : index
      %39 = vector.load %arg6[%c1, %c0_42, %c0_43] : memref<4x16x16xf32, #tpu.memory_space<vmem>>, vector<1x16x16xf32>
      %40 = vector.shape_cast %39 : vector<1x16x16xf32> to vector<16x16xf32>
      %41 = vector.shape_cast %38 : vector<16x16xf32> to vector<1x16x16xf32>
      tpu.vector_store %arg6[%c1, %c0_42, %c0_43], %41 {strides = array<i32>} : memref<4x16x16xf32, #tpu.memory_space<vmem>>, vector<1x16x16xf32>,
      %c0_44 = arith.constant 0 : index
      %c16_45 = arith.constant 16 : index
      %42 = vector.load %arg10[%c0_44, %c16_45] : memref<16x64xf32, #tpu.memory_space<vmem>>, vector<16x16xf32>
      %c1_46 = arith.constant 1 : index
      %c0_47 = arith.constant 0 : index
      %c0_48 = arith.constant 0 : index
      %43 = vector.load %arg7[%c1_46, %c0_47, %c0_48] : memref<4x16x16xf32, #tpu.memory_space<vmem>>, vector<1x16x16xf32>
      %44 = vector.shape_cast %43 : vector<1x16x16xf32> to vector<16x16xf32>
      %45 = vector.shape_cast %42 : vector<16x16xf32> to vector<1x16x16xf32>
      tpu.vector_store %arg7[%c1_46, %c0_47, %c0_48], %45 {strides = array<i32>} : memref<4x16x16xf32, #tpu.memory_space<vmem>>, vector<1x16x16xf32>,
      %c0_49 = arith.constant 0 : index
      %c16_50 = arith.constant 16 : index
      %46 = vector.load %arg11[%c0_49, %c16_50] : memref<16x64xf32, #tpu.memory_space<vmem>>, vector<16x16xf32>
      %c1_51 = arith.constant 1 : index
      %c0_52 = arith.constant 0 : index
      %c0_53 = arith.constant 0 : index
      %47 = vector.load %arg8[%c1_51, %c0_52, %c0_53] : memref<4x16x16xf32, #tpu.memory_space<vmem>>, vector<1x16x16xf32>
      %48 = vector.shape_cast %47 : vector<1x16x16xf32> to vector<16x16xf32>
      %49 = vector.shape_cast %46 : vector<16x16xf32> to vector<1x16x16xf32>
      tpu.vector_store %arg8[%c1_51, %c0_52, %c0_53], %49 {strides = array<i32>} : memref<4x16x16xf32, #tpu.memory_space<vmem>>, vector<1x16x16xf32>,
      %c0_54 = arith.constant 0 : index
      %c32 = arith.constant 32 : index
      %50 = vector.load %arg9[%c0_54, %c32] : memref<16x64xf32, #tpu.memory_space<vmem>>, vector<16x16xf32>
      %cst_55 = arith.constant 2.500000e-01 : f32
      %51 = vector.broadcast %cst_55 : f32 to vector<16x16xf32>
      %52 = arith.mulf %50, %51 : vector<16x16xf32>
      %c2 = arith.constant 2 : index
      %c0_56 = arith.constant 0 : index
      %c0_57 = arith.constant 0 : index
      %53 = vector.load %arg6[%c2, %c0_56, %c0_57] : memref<4x16x16xf32, #tpu.memory_space<vmem>>, vector<1x16x16xf32>
      %54 = vector.shape_cast %53 : vector<1x16x16xf32> to vector<16x16xf32>
      %55 = vector.shape_cast %52 : vector<16x16xf32> to vector<1x16x16xf32>
      tpu.vector_store %arg6[%c2, %c0_56, %c0_57], %55 {strides = array<i32>} : memref<4x16x16xf32, #tpu.memory_space<vmem>>, vector<1x16x16xf32>,
      %c0_58 = arith.constant 0 : index
      %c32_59 = arith.constant 32 : index
      %56 = vector.load %arg10[%c0_58, %c32_59] : memref<16x64xf32, #tpu.memory_space<vmem>>, vector<16x16xf32>
      %c2_60 = arith.constant 2 : index
      %c0_61 = arith.constant 0 : index
      %c0_62 = arith.constant 0 : index
      %57 = vector.load %arg7[%c2_60, %c0_61, %c0_62] : memref<4x16x16xf32, #tpu.memory_space<vmem>>, vector<1x16x16xf32>
      %58 = vector.shape_cast %57 : vector<1x16x16xf32> to vector<16x16xf32>
      %59 = vector.shape_cast %56 : vector<16x16xf32> to vector<1x16x16xf32>
      tpu.vector_store %arg7[%c2_60, %c0_61, %c0_62], %59 {strides = array<i32>} : memref<4x16x16xf32, #tpu.memory_space<vmem>>, vector<1x16x16xf32>,
      %c0_63 = arith.constant 0 : index
      %c32_64 = arith.constant 32 : index
      %60 = vector.load %arg11[%c0_63, %c32_64] : memref<16x64xf32, #tpu.memory_space<vmem>>, vector<16x16xf32>
      %c2_65 = arith.constant 2 : index
      %c0_66 = arith.constant 0 : index
      %c0_67 = arith.constant 0 : index
      %61 = vector.load %arg8[%c2_65, %c0_66, %c0_67] : memref<4x16x16xf32, #tpu.memory_space<vmem>>, vector<1x16x16xf32>
      %62 = vector.shape_cast %61 : vector<1x16x16xf32> to vector<16x16xf32>
      %63 = vector.shape_cast %60 : vector<16x16xf32> to vector<1x16x16xf32>
      tpu.vector_store %arg8[%c2_65, %c0_66, %c0_67], %63 {strides = array<i32>} : memref<4x16x16xf32, #tpu.memory_space<vmem>>, vector<1x16x16xf32>,
      %c0_68 = arith.constant 0 : index
      %c48 = arith.constant 48 : index
      %64 = vector.load %arg9[%c0_68, %c48] : memref<16x64xf32, #tpu.memory_space<vmem>>, vector<16x16xf32>
      %cst_69 = arith.constant 2.500000e-01 : f32
      %65 = vector.broadcast %cst_69 : f32 to vector<16x16xf32>
      %66 = arith.mulf %64, %65 : vector<16x16xf32>
      %c3 = arith.constant 3 : index
      %c0_70 = arith.constant 0 : index
      %c0_71 = arith.constant 0 : index
      %67 = vector.load %arg6[%c3, %c0_70, %c0_71] : memref<4x16x16xf32, #tpu.memory_space<vmem>>, vector<1x16x16xf32>
      %68 = vector.shape_cast %67 : vector<1x16x16xf32> to vector<16x16xf32>
      %69 = vector.shape_cast %66 : vector<16x16xf32> to vector<1x16x16xf32>
      tpu.vector_store %arg6[%c3, %c0_70, %c0_71], %69 {strides = array<i32>} : memref<4x16x16xf32, #tpu.memory_space<vmem>>, vector<1x16x16xf32>,
      %c0_72 = arith.constant 0 : index
      %c48_73 = arith.constant 48 : index
      %70 = vector.load %arg10[%c0_72, %c48_73] : memref<16x64xf32, #tpu.memory_space<vmem>>, vector<16x16xf32>
      %c3_74 = arith.constant 3 : index
      %c0_75 = arith.constant 0 : index
      %c0_76 = arith.constant 0 : index
      %71 = vector.load %arg7[%c3_74, %c0_75, %c0_76] : memref<4x16x16xf32, #tpu.memory_space<vmem>>, vector<1x16x16xf32>
      %72 = vector.shape_cast %71 : vector<1x16x16xf32> to vector<16x16xf32>
      %73 = vector.shape_cast %70 : vector<16x16xf32> to vector<1x16x16xf32>
      tpu.vector_store %arg7[%c3_74, %c0_75, %c0_76], %73 {strides = array<i32>} : memref<4x16x16xf32, #tpu.memory_space<vmem>>, vector<1x16x16xf32>,
      %c0_77 = arith.constant 0 : index
      %c48_78 = arith.constant 48 : index
      %74 = vector.load %arg11[%c0_77, %c48_78] : memref<16x64xf32, #tpu.memory_space<vmem>>, vector<16x16xf32>
      %c3_79 = arith.constant 3 : index
      %c0_80 = arith.constant 0 : index
      %c0_81 = arith.constant 0 : index
      %75 = vector.load %arg8[%c3_79, %c0_80, %c0_81] : memref<4x16x16xf32, #tpu.memory_space<vmem>>, vector<1x16x16xf32>
      %76 = vector.shape_cast %75 : vector<1x16x16xf32> to vector<16x16xf32>
      %77 = vector.shape_cast %74 : vector<16x16xf32> to vector<1x16x16xf32>
      tpu.vector_store %arg8[%c3_79, %c0_80, %c0_81], %77 {strides = array<i32>} : memref<4x16x16xf32, #tpu.memory_space<vmem>>, vector<1x16x16xf32>,
    } else {
    }
    return
  }
  func.func @transform_0(%arg0: i32, %arg1: i32) -> (i32, i32) {
    %c0_i32 = arith.constant 0 : i32
    return %arg0, %arg1 : i32, i32
  }
  func.func @transform_1(%arg0: i32, %arg1: i32) -> (i32, i32) {
    %c0_i32 = arith.constant 0 : i32
    %c0_i32_0 = arith.constant 0 : i32
    return %arg1, %c0_i32 : i32, i32
  }
  func.func @transform_2(%arg0: i32, %arg1: i32) -> (i32, i32) {
    %c0_i32 = arith.constant 0 : i32
    %c0_i32_0 = arith.constant 0 : i32
    return %arg1, %c0_i32 : i32, i32
  }
  func.func @transform_3(%arg0: i32, %arg1: i32) -> (i32, i32) {
    %c0_i32 = arith.constant 0 : i32
    %c0_i32_0 = arith.constant 0 : i32
    return %arg1, %c0_i32 : i32, i32
  }
  func.func @transform_4(%arg0: i32, %arg1: i32) -> (i32, i32, i32) {
    %c0_i32 = arith.constant 0 : i32
    %c0_i32_0 = arith.constant 0 : i32
    %c0_i32_1 = arith.constant 0 : i32
    return %c0_i32, %arg0, %c0_i32_0 : i32, i32, i32
  }
  func.func @transform_5(%arg0: i32, %arg1: i32) -> (i32, i32, i32) {
    %c0_i32 = arith.constant 0 : i32
    %c0_i32_0 = arith.constant 0 : i32
    %c0_i32_1 = arith.constant 0 : i32
    return %c0_i32, %arg0, %c0_i32_0 : i32, i32, i32
  }
  func.func @transform_6(%arg0: i32, %arg1: i32) -> (i32, i32, i32) {
    %c0_i32 = arith.constant 0 : i32
    %c0_i32_0 = arith.constant 0 : i32
    %c0_i32_1 = arith.constant 0 : i32
    return %c0_i32, %arg0, %c0_i32_0 : i32, i32, i32
  }
}

</mosaic_0001>

<llo_original>
// kernel: tpu_custom_call.1
$region0: #{tpu_custom_call.1}
  #allocation0 [shape = 'u32[]', space=smem, size = 0x4, offset = 0x4, fixed_abs, tag = 'smem constant byte address 0x4 - core index']
  #allocation1 [shape = 'u32[144,128]{1,0:T(1,128)}', space=vmem, size = 0x12000, scoped, tag = 'internal scratch']
  #allocation2 [shape = 'f32[16,64]{1,0:T(8,128)}', space=vmem, size = 0x2000, scoped, tag = 'scratch operand']
  #allocation3 [shape = 'f32[16,64]{1,0:T(8,128)}', space=vmem, size = 0x2000, scoped, tag = 'scratch operand']
  #allocation4 [shape = 'f32[16,64]{1,0:T(8,128)}', space=vmem, size = 0x2000, scoped, tag = 'scratch operand']
  %s0 = inlined_call_operand.hbm [shape: f32[16,32], index: 0, kind: input, shape index: {}]
  %s1 = inlined_call_operand.hbm [shape: f32[32,64], index: 1, kind: input, shape index: {}]
  %s2 = inlined_call_operand.hbm [shape: f32[32,64], index: 2, kind: input, shape index: {}]
  %s3 = inlined_call_operand.hbm [shape: f32[32,64], index: 3, kind: input, shape index: {}]
  %s4 = inlined_call_operand.hbm [shape: f32[4,16,16], index: 4, kind: output, shape index: {0}]
  %s5 = inlined_call_operand.hbm [shape: f32[4,16,16], index: 5, kind: output, shape index: {1}]
  %s6 = inlined_call_operand.hbm [shape: f32[4,16,16], index: 6, kind: output, shape index: {2}]
  %7 = xla_tuple %s4, %s5, %s6
  %s8 = sld [smem:[#allocation0]]
  $region66: #{tpu_custom_call.1} parent=0
    _
  %s10 = ssub.s32 1, %s8
  %s11 = scalar_select 0, %s10, %s8
  $region1: #{tpu_custom_call.1} parent=0
    #allocation5 [shape = 'u8[8192]{0}', space=vmem, size = 0x2000, scoped, tag = 'input window, operand 0, single buffered']
    #allocation6 [shape = 's32[1]{0}', space=sflag, size = 0x4, scoped, tag = 'scoped memory for tpu_custom_call.1']
    #allocation7 [shape = 's32[1]{0}', space=sflag, size = 0x4, scoped, tag = 'scoped memory for tpu_custom_call.1']
    #allocation8 [shape = 'u8[16384]{0}', space=vmem, size = 0x4000, scoped, tag = 'input window, operand 1, single buffered']
    #allocation9 [shape = 's32[1]{0}', space=sflag, size = 0x4, scoped, tag = 'scoped memory for tpu_custom_call.1']
    #allocation10 [shape = 'u8[16384]{0}', space=vmem, size = 0x4000, scoped, tag = 'input window, operand 2, single buffered']
    #allocation11 [shape = 'u8[16384]{0}', space=vmem, size = 0x4000, scoped, tag = 'input window, operand 3, single buffered']
    #allocation12 [shape = 's32[1]{0}', space=sflag, size = 0x4, scoped, tag = 'scoped memory for tpu_custom_call.1']
    #allocation13 [shape = 'u8[32768]{0}', space=vmem, size = 0x8000, scoped, tag = 'output window, operand 0, single buffered']
    #allocation14 [shape = 'u8[32768]{0}', space=vmem, size = 0x8000, scoped, tag = 'output window, operand 1, single buffered']
    #allocation15 [shape = 's32[1]{0}', space=sflag, size = 0x4, scoped, tag = 'scoped memory for tpu_custom_call.1']
    #allocation16 [shape = 'u8[32768]{0}', space=vmem, size = 0x8000, scoped, tag = 'output window, operand 2, single buffered']
    %12 = vsyncpa [#allocation6], 0
    %13 = vsyncpa [#allocation9], 0
    %14 = vsyncpa [#allocation12], 0
    %15 = vsyncpa [#allocation7], 0
    %16 = vsyncpa [#allocation15], 0
    // Predicated region
    $region2: #{tpu_custom_call.1} parent=1 // pred_check
      _
    $region3: #{tpu_custom_call.1} parent=1 // pred_check_branch
      %18 = sbr.rel (0) target = $region5
    $region4: #{tpu_custom_call.1} parent=1 // pred_region
      %s20 = ssub.s32 256, 256
      %21 = vsyncadd [#allocation6], %s20
      %s22 = sshll.u32 [#allocation5], 4
      %s23 = int_to_ptr.vmem [resolvable:$true] %s22
      %28 = dma.hbm_to_vmem [thread:$0]  %s0, 256, %s23, [#allocation6], 128, 128, 8
    $region5: #{tpu_custom_call.1} parent=1 // pred_fallthru
      _
    // Predicated region
    $region6: #{tpu_custom_call.1} parent=1 // pred_check
      _
    $region7: #{tpu_custom_call.1} parent=1 // pred_check_branch
      %30 = sbr.rel (0) target = $region9
    $region8: #{tpu_custom_call.1} parent=1 // pred_region
      %s32 = ssub.s32 512, 512
      %33 = vsyncadd [#allocation9], %s32
      %s34 = sshll.u32 [#allocation8], 4
      %s35 = int_to_ptr.vmem [resolvable:$true] %s34
      %40 = dma.hbm_to_vmem [thread:$0]  %s1, 512, %s35, [#allocation9], 128, 128, 8
    $region9: #{tpu_custom_call.1} parent=1 // pred_fallthru
      _
    // Predicated region
    $region10: #{tpu_custom_call.1} parent=1 // pred_check
      _
    $region11: #{tpu_custom_call.1} parent=1 // pred_check_branch
      %42 = sbr.rel (0) target = $region13
    $region12: #{tpu_custom_call.1} parent=1 // pred_region
      %s44 = ssub.s32 512, 512
      %45 = vsyncadd [#allocation9], %s44
      %s46 = sshll.u32 [#allocation10], 4
      %s47 = int_to_ptr.vmem [resolvable:$true] %s46
      %52 = dma.hbm_to_vmem [thread:$0]  %s2, 512, %s47, [#allocation9], 128, 128, 8
    $region13: #{tpu_custom_call.1} parent=1 // pred_fallthru
      _
    // Predicated region
    $region14: #{tpu_custom_call.1} parent=1 // pred_check
      _
    $region15: #{tpu_custom_call.1} parent=1 // pred_check_branch
      %54 = sbr.rel (0) target = $region17
    $region16: #{tpu_custom_call.1} parent=1 // pred_region
      %s56 = ssub.s32 512, 512
      %57 = vsyncadd [#allocation12], %s56
      %s58 = sshll.u32 [#allocation11], 4
      %s59 = int_to_ptr.vmem [resolvable:$true] %s58
      %64 = dma.hbm_to_vmem [thread:$0]  %s3, 512, %s59, [#allocation12], 128, 128, 8
    $region17: #{tpu_custom_call.1} parent=1 // pred_fallthru
      _
    // Predicated region
    $region18: #{tpu_custom_call.1} parent=1 // pred_check
      _
    $region19: #{tpu_custom_call.1} parent=1 // pred_check_branch
      %66 = sbr.rel (0) target = $region21
    $region20: #{tpu_custom_call.1} parent=1 // pred_region
      %67 = dma.done [#allocation6], 256
    $region21: #{tpu_custom_call.1} parent=1 // pred_fallthru
      _
    // Predicated region
    $region22: #{tpu_custom_call.1} parent=1 // pred_check
      _
    $region23: #{tpu_custom_call.1} parent=1 // pred_check_branch
      %69 = sbr.rel (0) target = $region25
    $region24: #{tpu_custom_call.1} parent=1 // pred_region
      %70 = dma.done [#allocation9], 512
    $region25: #{tpu_custom_call.1} parent=1 // pred_fallthru
      _
    // Predicated region
    $region26: #{tpu_custom_call.1} parent=1 // pred_check
      _
    $region27: #{tpu_custom_call.1} parent=1 // pred_check_branch
      %72 = sbr.rel (0) target = $region29
    $region28: #{tpu_custom_call.1} parent=1 // pred_region
      %73 = dma.done [#allocation9], 512
    $region29: #{tpu_custom_call.1} parent=1 // pred_fallthru
      _
    // Predicated region
    $region30: #{tpu_custom_call.1} parent=1 // pred_check
      _
    $region31: #{tpu_custom_call.1} parent=1 // pred_check_branch
      %75 = sbr.rel (0) target = $region33
    $region32: #{tpu_custom_call.1} parent=1 // pred_region
      %76 = dma.done [#allocation12], 512
    $region33: #{tpu_custom_call.1} parent=1 // pred_fallthru
      _
    %p77 = scmp.eq.s32.totalorder 0, 0
    // Predicated region
    $region34: #{tpu_custom_call.1} parent=1 // pred_check
      %p78 = pneg %p77
    $region35: #{tpu_custom_call.1} parent=1 // pred_check_branch
      %80 = sbr.rel (%p78) target = $region37
    $region36: #{tpu_custom_call.1} parent=1 // pred_region
      %vm81 = vcmask 523264
      %82 = vst.msk [vmem:[#allocation2] sm:$0xff] %vm81, 0.0
      %83 = vst.msk [vmem:[#allocation2 + $0x8] sm:$0xff] %vm81, 0.0
      %84 = vst.msk [vmem:[#allocation3] sm:$0xff] %vm81, 0.0
      %85 = vst.msk [vmem:[#allocation3 + $0x8] sm:$0xff] %vm81, 0.0
      %86 = vst.msk [vmem:[#allocation4] sm:$0xff] %vm81, 0.0
      %87 = vst.msk [vmem:[#allocation4 + $0x8] sm:$0xff] %vm81, 0.0
    $region37: #{tpu_custom_call.1} parent=1 // pred_fallthru
      _
    %v88 = vld [vmem:[#allocation5] sm:$0xff]
    %v89 = vld [vmem:[#allocation5 + $0x8] sm:$0xff]
    %v90 = vld [vmem:[#allocation2] sm:$0xff]
    %v91 = vld [vmem:[#allocation2 + $0x8] sm:$0xff]
    %v92 = vld [vmem:[#allocation8] sm:$0xff]
    %v93 = vld [vmem:[#allocation8 + $0x8] sm:$0xff]
    %v94 = vld [vmem:[#allocation8 + $0x10] sm:$0xff]
    %v95 = vld [vmem:[#allocation8 + $0x18] sm:$0xff]
    %vm96 = vcmask 261120
    %v98 = vsel %vm96, %v88, 0
    %v101 = vsel %vm96, %v89, 0
    %103 = vmatprep.subr.mxu0 0.0
    %104 = vmatpush1.msra.mxu0 %v92
    %105 = vmatprep.subr.mxu0 0.0
    %106 = vmatpush1.msra.mxu0 %v93
    %107 = vmatprep.subr.mxu0 0.0
    %108 = vmatpush1.msra.mxu0 %v94
    %109 = vmatprep.subr.mxu0 0.0
    %110 = vmatpush1.msra.mxu0 %v95
    %111 = vmatprep.subr.mxu0 0.0
    %112 = vmatpush1.msra.mxu0 0.0
    %113 = vmatprep.subr.mxu0 0.0
    %114 = vmatpush1.msra.mxu0 0.0
    %115 = vmatprep.subr.mxu0 0.0
    %116 = vmatpush1.msra.mxu0 0.0
    %117 = vmatprep.subr.mxu0 0.0
    %118 = vmatpush1.msra.mxu0 0.0
    %119 = vmatprep.subr.mxu0 0.0
    %120 = vmatpush1.msra.mxu0 0.0
    %121 = vmatprep.subr.mxu0 0.0
    %122 = vmatpush1.msra.mxu0 0.0
    %123 = vmatprep.subr.mxu0 0.0
    %124 = vmatpush1.msra.mxu0 0.0
    %125 = vmatprep.subr.mxu0 0.0
    %126 = vmatpush1.msra.mxu0 0.0
    %127 = vmatprep.subr.mxu0 0.0
    %128 = vmatpush1.msra.mxu0 0.0
    %129 = vmatprep.subr.mxu0 0.0
    %130 = vmatpush1.msra.mxu0 0.0
    %131 = vmatprep.subr.mxu0 0.0
    %132 = vmatpush1.msra.mxu0 0.0
    %133 = vmatprep.subr.mxu0 0.0
    %134 = vmatpush1.msra.mxu0 0.0
    %135 = vmatprep.subr.mxu0 0.0
    %136 = vmatpush1.msra.mxu0 0.0
    %137 = vmatprep.subr.mxu0 0.0
    %138 = vmatpush1.msra.mxu0 0.0
    %139 = vmatprep.subr.mxu0 0.0
    %140 = vmatpush1.msra.mxu0 0.0
    %141 = vmatprep.subr.mxu0 0.0
    %142 = vmatpush1.msra.mxu0 0.0
    %143 = vmatprep.subr.mxu0 0.0
    %144 = vmatpush1.msra.mxu0 0.0
    %145 = vmatprep.subr.mxu0 0.0
    %146 = vmatpush1.msra.mxu0 0.0
    %147 = vmatprep.subr.mxu0 0.0
    %148 = vmatpush1.msra.mxu0 0.0
    %149 = vmatprep.subr.mxu0 0.0
    %150 = vmatpush1.msra.mxu0 0.0
    %151 = vmatprep.subr.mxu0 0.0
    %152 = vmatpush1.msra.mxu0 0.0
    %153 = vmatprep.subr.mxu0 0.0
    %154 = vmatpush1.msra.mxu0 0.0
    %155 = vmatprep.subr.mxu0 0.0
    %156 = vmatpush1.msra.mxu0 0.0
    %157 = vmatprep.subr.mxu0 0.0
    %158 = vmatpush1.msra.mxu0 0.0
    %159 = vmatprep.subr.mxu0 0.0
    %160 = vmatpush1.msra.mxu0 0.0
    %161 = vmatprep.subr.mxu0 0.0
    %162 = vmatpush1.msra.mxu0 0.0
    %163 = vmatprep.subr.mxu0 0.0
    %164 = vmatpush1.msra.mxu0 0.0
    %165 = vmatprep.subr.mxu0 0.0
    %166 = vmatpush1.msra.mxu0 0.0
    %167 = vmatprep.mubr.f32.mxu0 0.0
    %168 = vmatmul.mubr.f32.gmra.mrb[0].mxu0 %v98
    %v169 = vpop.f32.mrb[0].mxu0
    %v170 = vadd.f32 0.0, %v169
    %v171 = vpop.f32.mrb[0].mxu0
    %172 = vmatprep.mubr.f32.mxu0 0.0
    %173 = vmatmul.mubr.f32.gmra.mrb[0].mxu0 %v101
    %v174 = vpop.f32.mrb[0].mxu0
    %v175 = vadd.f32 0.0, %v174
    %v176 = vpop.f32.mrb[0].mxu0
    %177 = vdwg.mxu0
    %v178 = vadd.f32 %v90, %v170
    %v179 = vadd.f32 %v91, %v175
    %vm180 = vcmask 523264
    %181 = vst.msk [vmem:[#allocation2] sm:$0xff] %vm180, %v178
    %182 = vst.msk [vmem:[#allocation2 + $0x8] sm:$0xff] %vm180, %v179
    %v183 = vld [vmem:[#allocation3] sm:$0xff]
    %v184 = vld [vmem:[#allocation3 + $0x8] sm:$0xff]
    %v185 = vld [vmem:[#allocation10] sm:$0xff]
    %v186 = vld [vmem:[#allocation10 + $0x8] sm:$0xff]
    %v187 = vld [vmem:[#allocation10 + $0x10] sm:$0xff]
    %v188 = vld [vmem:[#allocation10 + $0x18] sm:$0xff]
    %189 = vmatprep.subr.mxu0 0.0
    %190 = vmatpush1.msra.mxu0 %v185
    %191 = vmatprep.subr.mxu0 0.0
    %192 = vmatpush1.msra.mxu0 %v186
    %193 = vmatprep.subr.mxu0 0.0
    %194 = vmatpush1.msra.mxu0 %v187
    %195 = vmatprep.subr.mxu0 0.0
    %196 = vmatpush1.msra.mxu0 %v188
    %197 = vmatprep.subr.mxu0 0.0
    %198 = vmatpush1.msra.mxu0 0.0
    %199 = vmatprep.subr.mxu0 0.0
    %200 = vmatpush1.msra.mxu0 0.0
    %201 = vmatprep.subr.mxu0 0.0
    %202 = vmatpush1.msra.mxu0 0.0
    %203 = vmatprep.subr.mxu0 0.0
    %204 = vmatpush1.msra.mxu0 0.0
    %205 = vmatprep.subr.mxu0 0.0
    %206 = vmatpush1.msra.mxu0 0.0
    %207 = vmatprep.subr.mxu0 0.0
    %208 = vmatpush1.msra.mxu0 0.0
    %209 = vmatprep.subr.mxu0 0.0
    %210 = vmatpush1.msra.mxu0 0.0
    %211 = vmatprep.subr.mxu0 0.0
    %212 = vmatpush1.msra.mxu0 0.0
    %213 = vmatprep.subr.mxu0 0.0
    %214 = vmatpush1.msra.mxu0 0.0
    %215 = vmatprep.subr.mxu0 0.0
    %216 = vmatpush1.msra.mxu0 0.0
    %217 = vmatprep.subr.mxu0 0.0
    %218 = vmatpush1.msra.mxu0 0.0
    %219 = vmatprep.subr.mxu0 0.0
    %220 = vmatpush1.msra.mxu0 0.0
    %221 = vmatprep.subr.mxu0 0.0
    %222 = vmatpush1.msra.mxu0 0.0
    %223 = vmatprep.subr.mxu0 0.0
    %224 = vmatpush1.msra.mxu0 0.0
    %225 = vmatprep.subr.mxu0 0.0
    %226 = vmatpush1.msra.mxu0 0.0
    %227 = vmatprep.subr.mxu0 0.0
    %228 = vmatpush1.msra.mxu0 0.0
    %229 = vmatprep.subr.mxu0 0.0
    %230 = vmatpush1.msra.mxu0 0.0
    %231 = vmatprep.subr.mxu0 0.0
    %232 = vmatpush1.msra.mxu0 0.0
    %233 = vmatprep.subr.mxu0 0.0
    %234 = vmatpush1.msra.mxu0 0.0
    %235 = vmatprep.subr.mxu0 0.0
    %236 = vmatpush1.msra.mxu0 0.0
    %237 = vmatprep.subr.mxu0 0.0
    %238 = vmatpush1.msra.mxu0 0.0
    %239 = vmatprep.subr.mxu0 0.0
    %240 = vmatpush1.msra.mxu0 0.0
    %241 = vmatprep.subr.mxu0 0.0
    %242 = vmatpush1.msra.mxu0 0.0
    %243 = vmatprep.subr.mxu0 0.0
    %244 = vmatpush1.msra.mxu0 0.0
    %245 = vmatprep.subr.mxu0 0.0
    %246 = vmatpush1.msra.mxu0 0.0
    %247 = vmatprep.subr.mxu0 0.0
    %248 = vmatpush1.msra.mxu0 0.0
    %249 = vmatprep.subr.mxu0 0.0
    %250 = vmatpush1.msra.mxu0 0.0
    %251 = vmatprep.subr.mxu0 0.0
    %252 = vmatpush1.msra.mxu0 0.0
    %253 = vmatprep.mubr.f32.mxu0 0.0
    %254 = vmatmul.mubr.f32.gmra.mrb[0].mxu0 %v98
    %v255 = vpop.f32.mrb[0].mxu0
    %v256 = vadd.f32 0.0, %v255
    %v257 = vpop.f32.mrb[0].mxu0
    %258 = vmatprep.mubr.f32.mxu0 0.0
    %259 = vmatmul.mubr.f32.gmra.mrb[0].mxu0 %v101
    %v260 = vpop.f32.mrb[0].mxu0
    %v261 = vadd.f32 0.0, %v260
    %v262 = vpop.f32.mrb[0].mxu0
    %263 = vdwg.mxu0
    %v264 = vadd.f32 %v183, %v256
    %v265 = vadd.f32 %v184, %v261
    %266 = vst.msk [vmem:[#allocation3] sm:$0xff] %vm180, %v264
    %267 = vst.msk [vmem:[#allocation3 + $0x8] sm:$0xff] %vm180, %v265
    %v268 = vld [vmem:[#allocation4] sm:$0xff]
    %v269 = vld [vmem:[#allocation4 + $0x8] sm:$0xff]
    %v270 = vld [vmem:[#allocation11] sm:$0xff]
    %v271 = vld [vmem:[#allocation11 + $0x8] sm:$0xff]
    %v272 = vld [vmem:[#allocation11 + $0x10] sm:$0xff]
    %v273 = vld [vmem:[#allocation11 + $0x18] sm:$0xff]
    %274 = vmatprep.subr.mxu0 0.0
    %275 = vmatpush1.msra.mxu0 %v270
    %276 = vmatprep.subr.mxu0 0.0
    %277 = vmatpush1.msra.mxu0 %v271
    %278 = vmatprep.subr.mxu0 0.0
    %279 = vmatpush1.msra.mxu0 %v272
    %280 = vmatprep.subr.mxu0 0.0
    %281 = vmatpush1.msra.mxu0 %v273
    %282 = vmatprep.subr.mxu0 0.0
    %283 = vmatpush1.msra.mxu0 0.0
    %284 = vmatprep.subr.mxu0 0.0
    %285 = vmatpush1.msra.mxu0 0.0
    %286 = vmatprep.subr.mxu0 0.0
    %287 = vmatpush1.msra.mxu0 0.0
    %288 = vmatprep.subr.mxu0 0.0
    %289 = vmatpush1.msra.mxu0 0.0
    %290 = vmatprep.subr.mxu0 0.0
    %291 = vmatpush1.msra.mxu0 0.0
    %292 = vmatprep.subr.mxu0 0.0
    %293 = vmatpush1.msra.mxu0 0.0
    %294 = vmatprep.subr.mxu0 0.0
    %295 = vmatpush1.msra.mxu0 0.0
    %296 = vmatprep.subr.mxu0 0.0
    %297 = vmatpush1.msra.mxu0 0.0
    %298 = vmatprep.subr.mxu0 0.0
    %299 = vmatpush1.msra.mxu0 0.0
    %300 = vmatprep.subr.mxu0 0.0
    %301 = vmatpush1.msra.mxu0 0.0
    %302 = vmatprep.subr.mxu0 0.0
    %303 = vmatpush1.msra.mxu0 0.0
    %304 = vmatprep.subr.mxu0 0.0
    %305 = vmatpush1.msra.mxu0 0.0
    %306 = vmatprep.subr.mxu0 0.0
    %307 = vmatpush1.msra.mxu0 0.0
    %308 = vmatprep.subr.mxu0 0.0
    %309 = vmatpush1.msra.mxu0 0.0
    %310 = vmatprep.subr.mxu0 0.0
    %311 = vmatpush1.msra.mxu0 0.0
    %312 = vmatprep.subr.mxu0 0.0
    %313 = vmatpush1.msra.mxu0 0.0
    %314 = vmatprep.subr.mxu0 0.0
    %315 = vmatpush1.msra.mxu0 0.0
    %316 = vmatprep.subr.mxu0 0.0
    %317 = vmatpush1.msra.mxu0 0.0
    %318 = vmatprep.subr.mxu0 0.0
    %319 = vmatpush1.msra.mxu0 0.0
    %320 = vmatprep.subr.mxu0 0.0
    %321 = vmatpush1.msra.mxu0 0.0
    %322 = vmatprep.subr.mxu0 0.0
    %323 = vmatpush1.msra.mxu0 0.0
    %324 = vmatprep.subr.mxu0 0.0
    %325 = vmatpush1.msra.mxu0 0.0
    %326 = vmatprep.subr.mxu0 0.0
    %327 = vmatpush1.msra.mxu0 0.0
    %328 = vmatprep.subr.mxu0 0.0
    %329 = vmatpush1.msra.mxu0 0.0
    %330 = vmatprep.subr.mxu0 0.0
    %331 = vmatpush1.msra.mxu0 0.0
    %332 = vmatprep.subr.mxu0 0.0
    %333 = vmatpush1.msra.mxu0 0.0
    %334 = vmatprep.subr.mxu0 0.0
    %335 = vmatpush1.msra.mxu0 0.0
    %336 = vmatprep.subr.mxu0 0.0
    %337 = vmatpush1.msra.mxu0 0.0
    %338 = vmatprep.mubr.f32.mxu0 0.0
    %339 = vmatmul.mubr.f32.gmra.mrb[0].mxu0 %v98
    %v340 = vpop.f32.mrb[0].mxu0
    %v341 = vadd.f32 0.0, %v340
    %v342 = vpop.f32.mrb[0].mxu0
    %343 = vmatprep.mubr.f32.mxu0 0.0
    %344 = vmatmul.mubr.f32.gmra.mrb[0].mxu0 %v101
    %v345 = vpop.f32.mrb[0].mxu0
    %v346 = vadd.f32 0.0, %v345
    %v347 = vpop.f32.mrb[0].mxu0
    %348 = vdwg.mxu0
    %v349 = vadd.f32 %v268, %v341
    %v350 = vadd.f32 %v269, %v346
    %351 = vst.msk [vmem:[#allocation4] sm:$0xff] %vm180, %v349
    %352 = vst.msk [vmem:[#allocation4 + $0x8] sm:$0xff] %vm180, %v350
    // Predicated region
    $region38: #{tpu_custom_call.1} parent=1 // pred_check
      %p353 = pneg %p77
    $region39: #{tpu_custom_call.1} parent=1 // pred_check_branch
      %355 = sbr.rel (%p353) target = $region41
    $region40: #{tpu_custom_call.1} parent=1 // pred_region
      %v356 = vld [vmem:[#allocation2] sm:$0xff]
      %v357 = vld [vmem:[#allocation2 + $0x8] sm:$0xff]
      %v358 = vmul.f32 %v356, 0.25
      %v359 = vmul.f32 %v357, 0.25
      %vm360 = vcmask 130048
      %361 = vst.msk [vmem:[#allocation13] sm:$0xff] %vm360, %v358
      %362 = vst.msk [vmem:[#allocation13 + $0x8] sm:$0xff] %vm360, %v359
      %v363 = vld [vmem:[#allocation3] sm:$0xff]
      %v364 = vld [vmem:[#allocation3 + $0x8] sm:$0xff]
      %365 = vst.msk [vmem:[#allocation14] sm:$0xff] %vm360, %v363
      %366 = vst.msk [vmem:[#allocation14 + $0x8] sm:$0xff] %vm360, %v364
      %v367 = vld [vmem:[#allocation4] sm:$0xff]
      %v368 = vld [vmem:[#allocation4 + $0x8] sm:$0xff]
      %369 = vst.msk [vmem:[#allocation16] sm:$0xff] %vm360, %v367
      %370 = vst.msk [vmem:[#allocation16 + $0x8] sm:$0xff] %vm360, %v368
      %v371 = vld [vmem:[#allocation2] sm:$0xff]
      %v372 = vld [vmem:[#allocation2 + $0x8] sm:$0xff]
      %v373 = vmul.f32 %v371, 0.25
      %v374 = vmul.f32 %v372, 0.25
      %377 = vrot.lane.b32.xlu0 %v373, 112
      %v378 = vpop.permute.xlu0 %377
      %379 = vrot.lane.b32.xlu0 %v374, 112
      %v380 = vpop.permute.xlu0 %379
      %s383 = scalar_lea.vmem [#allocation13], 16
      %384 = vst.msk [vmem:[%s383] sm:$0xff] %vm360, %v378
      %385 = vst.msk [vmem:[%s383 + $0x8] sm:$0xff] %vm360, %v380
      %v386 = vld [vmem:[#allocation3] sm:$0xff]
      %v387 = vld [vmem:[#allocation3 + $0x8] sm:$0xff]
      %390 = vrot.lane.b32.xlu0 %v386, 112
      %v391 = vpop.permute.xlu0 %390
      %392 = vrot.lane.b32.xlu0 %v387, 112
      %v393 = vpop.permute.xlu0 %392
      %s396 = scalar_lea.vmem [#allocation14], 16
      %397 = vst.msk [vmem:[%s396] sm:$0xff] %vm360, %v391
      %398 = vst.msk [vmem:[%s396 + $0x8] sm:$0xff] %vm360, %v393
      %v399 = vld [vmem:[#allocation4] sm:$0xff]
      %v400 = vld [vmem:[#allocation4 + $0x8] sm:$0xff]
      %403 = vrot.lane.b32.xlu0 %v399, 112
      %v404 = vpop.permute.xlu0 %403
      %405 = vrot.lane.b32.xlu0 %v400, 112
      %v406 = vpop.permute.xlu0 %405
      %s409 = scalar_lea.vmem [#allocation16], 16
      %410 = vst.msk [vmem:[%s409] sm:$0xff] %vm360, %v404
      %411 = vst.msk [vmem:[%s409 + $0x8] sm:$0xff] %vm360, %v406
      %v412 = vld [vmem:[#allocation2] sm:$0xff]
      %v413 = vld [vmem:[#allocation2 + $0x8] sm:$0xff]
      %v414 = vmul.f32 %v412, 0.25
      %v415 = vmul.f32 %v413, 0.25
      %418 = vrot.lane.b32.xlu0 %v414, 96
      %v419 = vpop.permute.xlu0 %418
      %420 = vrot.lane.b32.xlu0 %v415, 96
      %v421 = vpop.permute.xlu0 %420
      %s424 = scalar_lea.vmem [#allocation13], 32
      %425 = vst.msk [vmem:[%s424] sm:$0xff] %vm360, %v419
      %426 = vst.msk [vmem:[%s424 + $0x8] sm:$0xff] %vm360, %v421
      %v427 = vld [vmem:[#allocation3] sm:$0xff]
      %v428 = vld [vmem:[#allocation3 + $0x8] sm:$0xff]
      %431 = vrot.lane.b32.xlu0 %v427, 96
      %v432 = vpop.permute.xlu0 %431
      %433 = vrot.lane.b32.xlu0 %v428, 96
      %v434 = vpop.permute.xlu0 %433
      %s437 = scalar_lea.vmem [#allocation14], 32
      %438 = vst.msk [vmem:[%s437] sm:$0xff] %vm360, %v432
      %439 = vst.msk [vmem:[%s437 + $0x8] sm:$0xff] %vm360, %v434
      %v440 = vld [vmem:[#allocation4] sm:$0xff]
      %v441 = vld [vmem:[#allocation4 + $0x8] sm:$0xff]
      %444 = vrot.lane.b32.xlu0 %v440, 96
      %v445 = vpop.permute.xlu0 %444
      %446 = vrot.lane.b32.xlu0 %v441, 96
      %v447 = vpop.permute.xlu0 %446
      %s450 = scalar_lea.vmem [#allocation16], 32
      %451 = vst.msk [vmem:[%s450] sm:$0xff] %vm360, %v445
      %452 = vst.msk [vmem:[%s450 + $0x8] sm:$0xff] %vm360, %v447
      %v453 = vld [vmem:[#allocation2] sm:$0xff]
      %v454 = vld [vmem:[#allocation2 + $0x8] sm:$0xff]
      %v455 = vmul.f32 %v453, 0.25
      %v456 = vmul.f32 %v454, 0.25
      %459 = vrot.lane.b32.xlu0 %v455, 80
      %v460 = vpop.permute.xlu0 %459
      %461 = vrot.lane.b32.xlu0 %v456, 80
      %v462 = vpop.permute.xlu0 %461
      %s465 = scalar_lea.vmem [#allocation13], 48
      %466 = vst.msk [vmem:[%s465] sm:$0xff] %vm360, %v460
      %467 = vst.msk [vmem:[%s465 + $0x8] sm:$0xff] %vm360, %v462
      %v468 = vld [vmem:[#allocation3] sm:$0xff]
      %v469 = vld [vmem:[#allocation3 + $0x8] sm:$0xff]
      %472 = vrot.lane.b32.xlu0 %v468, 80
      %v473 = vpop.permute.xlu0 %472
      %474 = vrot.lane.b32.xlu0 %v469, 80
      %v475 = vpop.permute.xlu0 %474
      %s478 = scalar_lea.vmem [#allocation14], 48
      %479 = vst.msk [vmem:[%s478] sm:$0xff] %vm360, %v473
      %480 = vst.msk [vmem:[%s478 + $0x8] sm:$0xff] %vm360, %v475
      %v481 = vld [vmem:[#allocation4] sm:$0xff]
      %v482 = vld [vmem:[#allocation4 + $0x8] sm:$0xff]
      %485 = vrot.lane.b32.xlu0 %v481, 80
      %v486 = vpop.permute.xlu0 %485
      %487 = vrot.lane.b32.xlu0 %v482, 80
      %v488 = vpop.permute.xlu0 %487
      %s491 = scalar_lea.vmem [#allocation16], 48
      %492 = vst.msk [vmem:[%s491] sm:$0xff] %vm360, %v486
      %493 = vst.msk [vmem:[%s491 + $0x8] sm:$0xff] %vm360, %v488
    $region41: #{tpu_custom_call.1} parent=1 // pred_fallthru
      _
    // Predicated region
    $region42: #{tpu_custom_call.1} parent=1 // pred_check
      _
    $region43: #{tpu_custom_call.1} parent=1 // pred_check_branch
      %495 = sbr.rel (0) target = $region45
    $region44: #{tpu_custom_call.1} parent=1 // pred_region
      %s497 = ssub.s32 1024, 1024
      %498 = vsyncadd [#allocation7], %s497
      %s499 = sshll.u32 [#allocation13], 4
      %s500 = int_to_ptr.vmem [resolvable:$true] %s499
      %505 = dma.vmem_to_hbm [thread:$0]  %s500, 1024, %s4, [#allocation7], 128, 128, 8
    $region45: #{tpu_custom_call.1} parent=1 // pred_fallthru
      _
    // Predicated region
    $region46: #{tpu_custom_call.1} parent=1 // pred_check
      _
    $region47: #{tpu_custom_call.1} parent=1 // pred_check_branch
      %507 = sbr.rel (0) target = $region49
    $region48: #{tpu_custom_call.1} parent=1 // pred_region
      %s509 = ssub.s32 1024, 1024
      %510 = vsyncadd [#allocation15], %s509
      %s511 = sshll.u32 [#allocation14], 4
      %s512 = int_to_ptr.vmem [resolvable:$true] %s511
      %517 = dma.vmem_to_hbm [thread:$0]  %s512, 1024, %s5, [#allocation15], 128, 128, 8
    $region49: #{tpu_custom_call.1} parent=1 // pred_fallthru
      _
    // Predicated region
    $region50: #{tpu_custom_call.1} parent=1 // pred_check
      _
    $region51: #{tpu_custom_call.1} parent=1 // pred_check_branch
      %519 = sbr.rel (0) target = $region53
    $region52: #{tpu_custom_call.1} parent=1 // pred_region
      %s521 = ssub.s32 1024, 1024
      %522 = vsyncadd [#allocation15], %s521
      %s523 = sshll.u32 [#allocation16], 4
      %s524 = int_to_ptr.vmem [resolvable:$true] %s523
      %529 = dma.vmem_to_hbm [thread:$0]  %s524, 1024, %s6, [#allocation15], 128, 128, 8
    $region53: #{tpu_custom_call.1} parent=1 // pred_fallthru
      _
    // Predicated region
    $region54: #{tpu_custom_call.1} parent=1 // pred_check
      _
    $region55: #{tpu_custom_call.1} parent=1 // pred_check_branch
      %531 = sbr.rel (0) target = $region57
    $region56: #{tpu_custom_call.1} parent=1 // pred_region
      %532 = dma.done [#allocation7], 1024
    $region57: #{tpu_custom_call.1} parent=1 // pred_fallthru
      _
    // Predicated region
    $region58: #{tpu_custom_call.1} parent=1 // pred_check
      _
    $region59: #{tpu_custom_call.1} parent=1 // pred_check_branch
      %534 = sbr.rel (0) target = $region61
    $region60: #{tpu_custom_call.1} parent=1 // pred_region
      %535 = dma.done [#allocation15], 1024
    $region61: #{tpu_custom_call.1} parent=1 // pred_fallthru
      _
    // Predicated region
    $region62: #{tpu_custom_call.1} parent=1 // pred_check
      _
    $region63: #{tpu_custom_call.1} parent=1 // pred_check_branch
      %537 = sbr.rel (0) target = $region65
    $region64: #{tpu_custom_call.1} parent=1 // pred_region
      %538 = dma.done [#allocation15], 1024
    $region65: #{tpu_custom_call.1} parent=1 // pred_fallthru
      _
    %539 = vsyncpa [#allocation6], 1
    %540 = vsyncpa [#allocation9], 1
    %541 = vsyncpa [#allocation12], 1
    %542 = vsyncpa [#allocation7], 1
    %543 = vsyncpa [#allocation15], 1

</llo_original>
